<compile_context>
chip_gen: v5e
topology: v5e:2x2
jax: 0.10.0
libtpu: 0.0.40
codegen_flags: <defaults>
</compile_context>

<pallas_src>
import functools

import jax
import jax.numpy as jnp
from jax.experimental import pallas as pl
from jax.experimental.pallas import tpu as pltpu


def _round_up(x: int, m: int) -> int:
    return (x + m - 1) // m * m


def mlp_kernel(x_ref, w1_ref, b1_ref, w2_ref, b2_ref, o_ref):
    # x tile arrives f32; cast to bf16 in-kernel (free on the VPU).
    x = x_ref[...].astype(jnp.bfloat16)
    # hidden = relu(x @ W1 + b1): bf16 MXU matmul, f32 accumulate, VPU bias+ReLU.
    h = jnp.dot(x, w1_ref[...], preferred_element_type=jnp.float32)
    h = jnp.maximum(h + b1_ref[...], 0.0)          # b1 is (1, HP), broadcasts over rows
    # out = hidden @ W2 + b2 : (TB, HP) @ (HP, C) -> (TB, C), stored unpadded.
    o = jnp.dot(h.astype(jnp.bfloat16), w2_ref[...],
                preferred_element_type=jnp.float32)
    o_ref[...] = (o + b2_ref[...]).astype(o_ref.dtype)


@functools.partial(jax.jit, static_argnames=("tb",))
def simple_classifier_forward(x, w1, b1, w2, b2, *, tb=None):
    """x: (B, input_dim) f32; w1: (input_dim, 16); b1: (16,);
    w2: (16, num_classes); b2: (num_classes,).  Returns (B, num_classes) f32."""
    B, input_dim = x.shape
    hidden = w1.shape[1]
    num_classes = w2.shape[1]

    # Hidden dim padded to a full lane tile (weights only; exact zero padding).
    HP = _round_up(hidden, 128)

    # Batch tile: multiple of 16 (bf16 sublane packing), big enough to
    # amortize per-step overhead, capped so double-buffered x/out tiles stay
    # tiny vs. any generation's scoped VMEM; aim for >= 2 grid steps so the
    # batch axis can shard across both TensorCores on v7x.
    TB_MAX = 2048
    TB_MIN = 16
    if tb is not None:
        TB = max(TB_MIN, _round_up(tb, 16))
    else:
        TB = min(TB_MAX, max(TB_MIN, _round_up(pl.cdiv(B, 2), 16)))
    num_tiles = pl.cdiv(B, TB)   # edge tile handled by Pallas masking

    # --- host-side prep: only the tiny weights are padded / cast -----------
    w1_p = jnp.pad(w1, ((0, 0), (0, HP - hidden))).astype(jnp.bfloat16)
    b1_p = jnp.pad(b1, (0, HP - hidden)).reshape(1, HP).astype(jnp.float32)
    w2_p = jnp.pad(w2, ((0, HP - hidden), (0, 0))).astype(jnp.bfloat16)
    b2_p = b2.reshape(1, num_classes).astype(jnp.float32)

    vmem = pltpu.MemorySpace.VMEM
    # Real (unpadded) work, as a scheduler hint.
    cost = pl.CostEstimate(
        flops=2 * B * (input_dim * hidden + hidden * num_classes),
        transcendentals=0,
        bytes_accessed=(B * input_dim * 4            # x (f32, read once)
                        + input_dim * hidden * 2     # w1 (bf16)
                        + hidden * 4                 # b1 (f32)
                        + hidden * num_classes * 2   # w2 (bf16)
                        + num_classes * 4            # b2 (f32)
                        + B * num_classes * 4))      # out (f32)

    out = pl.pallas_call(
        mlp_kernel,
        out_shape=jax.ShapeDtypeStruct((B, num_classes), jnp.float32),
        grid=(num_tiles,),
        in_specs=[
            # x streams through VMEM, tiled over the batch (double-buffered).
            pl.BlockSpec((TB, input_dim), lambda i: (i, 0), memory_space=vmem),
            # Weights / biases: same block every step -> stay VMEM-resident.
            pl.BlockSpec((input_dim, HP), lambda i: (0, 0), memory_space=vmem),
            pl.BlockSpec((1, HP), lambda i: (0, 0), memory_space=vmem),
            pl.BlockSpec((HP, num_classes), lambda i: (0, 0), memory_space=vmem),
            pl.BlockSpec((1, num_classes), lambda i: (0, 0), memory_space=vmem),
        ],
        # Unpadded output block: last dim == full array dim, so the (8,128)
        # rule doesn't apply; only the real 4 * 4 B per row reach HBM.
        out_specs=pl.BlockSpec((TB, num_classes), lambda i: (i, 0),
                               memory_space=vmem),
        compiler_params=pltpu.CompilerParams(
            dimension_semantics=("parallel",)),   # megacore sharding on v7x
        cost_estimate=cost,
    )(x, w1_p, b1_p, w2_p, b2_p)

    return out


def reference_forward_bf16(x, w1, b1, w2, b2):
    """Mirrors the kernel math (bf16 matmuls, f32 accumulate/bias/ReLU)."""
    h = jnp.dot(x.astype(jnp.bfloat16), w1.astype(jnp.bfloat16),
                preferred_element_type=jnp.float32) + b1
    h = jnp.maximum(h, 0.0)
    return jnp.dot(h.astype(jnp.bfloat16), w2.astype(jnp.bfloat16),
                   preferred_element_type=jnp.float32) + b2


def reference_forward_f32(x, w1, b1, w2, b2):
    h = jnp.maximum(x @ w1 + b1, 0.0)
    return h @ w2 + b2


if __name__ == "__main__":
    key = jax.random.PRNGKey(0)
    B, input_dim, hidden, num_classes = 20, 32, 16, 4   # B deliberately not a multiple of 16

    kx, k1, k2, k3, k4 = jax.random.split(key, 5)
    x = jax.random.normal(kx, (B, input_dim), dtype=jnp.float32)
    w1 = jax.random.normal(k1, (input_dim, hidden), dtype=jnp.float32) * 0.1
    b1 = jax.random.normal(k2, (hidden,), dtype=jnp.float32) * 0.1
    w2 = jax.random.normal(k3, (hidden, num_classes), dtype=jnp.float32) * 0.1
    b2 = jax.random.normal(k4, (num_classes,), dtype=jnp.float32) * 0.1

    # Default tile (2 grid steps at this size -> exercises the masked edge tile).
    out = jax.block_until_ready(simple_classifier_forward(x, w1, b1, w2, b2))
    # Forced tile to exercise an explicit multi-step grid path.
    out_tiled = jax.block_until_ready(
        simple_classifier_forward(x, w1, b1, w2, b2, tb=16))

    ref_bf16 = reference_forward_bf16(x, w1, b1, w2, b2)
    ref_f32 = reference_forward_f32(x, w1, b1, w2, b2)

    assert out.shape == (B, num_classes)
    assert out_tiled.shape == (B, num_classes)
    assert jnp.allclose(out, ref_bf16, atol=1e-3, rtol=1e-3), "mismatch vs bf16 reference"
    assert jnp.allclose(out_tiled, ref_bf16, atol=1e-3, rtol=1e-3), "tiled mismatch vs bf16 reference"
    assert jnp.allclose(out, ref_f32, atol=5e-2, rtol=5e-2), "mismatch vs f32 reference"

    print("KERNEL_OK")
</pallas_src>

<mosaic_0001>
module attributes {stable_mosaic.version = 11 : i64} {
  func.func @mlp_kernel(%arg0: i32, %arg1: memref<16x32xf32, #tpu.memory_space<vmem>>, %arg2: memref<32x128xbf16, #tpu.memory_space<vmem>>, %arg3: memref<1x128xf32, #tpu.memory_space<vmem>>, %arg4: memref<128x4xbf16, #tpu.memory_space<vmem>>, %arg5: memref<1x4xf32, #tpu.memory_space<vmem>>, %arg6: memref<16x4xf32, #tpu.memory_space<vmem>>) attributes {dimension_semantics = [#tpu.dimension_semantics<parallel>], iteration_bounds = array<i64: 2>, scalar_prefetch = 0 : i64, scratch_operands = 0 : i64, tpu.core_type = #tpu.core_type<tc>, window_params = [{transform_indices = @transform_0, window_bounds = array<i64: 16, 32>}, {pipeline_mode = #tpu.pipeline_mode<synchronous>, transform_indices = @transform_1, window_bounds = array<i64: 32, 128>}, {pipeline_mode = #tpu.pipeline_mode<synchronous>, transform_indices = @transform_2, window_bounds = array<i64: 1, 128>}, {pipeline_mode = #tpu.pipeline_mode<synchronous>, transform_indices = @transform_3, window_bounds = array<i64: 128, 4>}, {pipeline_mode = #tpu.pipeline_mode<synchronous>, transform_indices = @transform_4, window_bounds = array<i64: 1, 4>}, {transform_indices = @transform_5, window_bounds = array<i64: 16, 4>}]} {
    %c0 = arith.constant 0 : index
    %c0_0 = arith.constant 0 : index
    %0 = vector.load %arg1[%c0, %c0_0] : memref<16x32xf32, #tpu.memory_space<vmem>>, vector<16x32xf32>
    %1 = arith.truncf %0 : vector<16x32xf32> to vector<16x32xbf16>
    %c0_1 = arith.constant 0 : index
    %c0_2 = arith.constant 0 : index
    %2 = vector.load %arg2[%c0_1, %c0_2] : memref<32x128xbf16, #tpu.memory_space<vmem>>, vector<32x128xbf16>
    %cst = arith.constant dense<0.000000e+00> : vector<16x128xf32>
    %3 = tpu.matmul %1, %2, %cst {dimension_numbers = #tpu.dot_dimension_numbers<[1], [0], [0], [1], [0, 0, 1, 1], [], []>} : vector<16x32xbf16>, vector<32x128xbf16>, vector<16x128xf32> -> vector<16x128xf32>
    %c0_3 = arith.constant 0 : index
    %c0_4 = arith.constant 0 : index
    %4 = vector.load %arg3[%c0_3, %c0_4] : memref<1x128xf32, #tpu.memory_space<vmem>>, vector<1x128xf32>
    %5 = vector.broadcast %4 : vector<1x128xf32> to vector<16x128xf32>
    %6 = arith.addf %3, %5 : vector<16x128xf32>
    %cst_5 = arith.constant 0.000000e+00 : f32
    %7 = vector.broadcast %cst_5 : f32 to vector<16x128xf32>
    %8 = arith.maximumf %6, %7 : vector<16x128xf32>
    %9 = arith.truncf %8 : vector<16x128xf32> to vector<16x128xbf16>
    %c0_6 = arith.constant 0 : index
    %c0_7 = arith.constant 0 : index
    %10 = vector.load %arg4[%c0_6, %c0_7] : memref<128x4xbf16, #tpu.memory_space<vmem>>, vector<128x4xbf16>
    %cst_8 = arith.constant dense<0.000000e+00> : vector<16x4xf32>
    %11 = tpu.matmul %9, %10, %cst_8 {dimension_numbers = #tpu.dot_dimension_numbers<[1], [0], [0], [1], [0, 0, 1, 1], [], []>} : vector<16x128xbf16>, vector<128x4xbf16>, vector<16x4xf32> -> vector<16x4xf32>
    %c0_9 = arith.constant 0 : index
    %c0_10 = arith.constant 0 : index
    %12 = vector.load %arg5[%c0_9, %c0_10] : memref<1x4xf32, #tpu.memory_space<vmem>>, vector<1x4xf32>
    %13 = vector.broadcast %12 : vector<1x4xf32> to vector<16x4xf32>
    %14 = arith.addf %11, %13 : vector<16x4xf32>
    %c0_11 = arith.constant 0 : index
    %c0_12 = arith.constant 0 : index
    %15 = vector.load %arg6[%c0_11, %c0_12] : memref<16x4xf32, #tpu.memory_space<vmem>>, vector<16x4xf32>
    tpu.vector_store %arg6[%c0_11, %c0_12], %14 {strides = array<i32>} : memref<16x4xf32, #tpu.memory_space<vmem>>, vector<16x4xf32>,
    return
  }
  func.func @transform_0(%arg0: i32) -> (i32, i32) {
    %c0_i32 = arith.constant 0 : i32
    %c0_i32_0 = arith.constant 0 : i32
    return %arg0, %c0_i32 : i32, i32
  }
  func.func @transform_1(%arg0: i32) -> (i32, i32) {
    %c0_i32 = arith.constant 0 : i32
    %c0_i32_0 = arith.constant 0 : i32
    %c0_i32_1 = arith.constant 0 : i32
    return %c0_i32, %c0_i32_0 : i32, i32
  }
  func.func @transform_2(%arg0: i32) -> (i32, i32) {
    %c0_i32 = arith.constant 0 : i32
    %c0_i32_0 = arith.constant 0 : i32
    %c0_i32_1 = arith.constant 0 : i32
    return %c0_i32, %c0_i32_0 : i32, i32
  }
  func.func @transform_3(%arg0: i32) -> (i32, i32) {
    %c0_i32 = arith.constant 0 : i32
    %c0_i32_0 = arith.constant 0 : i32
    %c0_i32_1 = arith.constant 0 : i32
    return %c0_i32, %c0_i32_0 : i32, i32
  }
  func.func @transform_4(%arg0: i32) -> (i32, i32) {
    %c0_i32 = arith.constant 0 : i32
    %c0_i32_0 = arith.constant 0 : i32
    %c0_i32_1 = arith.constant 0 : i32
    return %c0_i32, %c0_i32_0 : i32, i32
  }
  func.func @transform_5(%arg0: i32) -> (i32, i32) {
    %c0_i32 = arith.constant 0 : i32
    %c0_i32_0 = arith.constant 0 : i32
    return %arg0, %c0_i32 : i32, i32
  }
}

</mosaic_0001>

<llo_original>
// kernel: simple_classifier_forward.1
$region0: #{simple_classifier_forward.1}
  #allocation0 [shape = 'u32[]', space=smem, size = 0x4, offset = 0x4, fixed_abs, tag = 'smem constant byte address 0x4 - core index']
  #allocation1 [shape = 'u32[72,128]{1,0:T(1,128)}', space=vmem, size = 0x9000, scoped, tag = 'internal scratch']
  %s0 = inlined_call_operand.vmem [shape: f32[20,32], index: 0, kind: input, shape index: {}]
  %s1 = inlined_call_operand.vmem [shape: bf16[32,128], index: 1, kind: input, shape index: {}]
  %s2 = inlined_call_operand.vmem [shape: f32[1,128], index: 2, kind: input, shape index: {}]
  %s3 = inlined_call_operand.vmem [shape: bf16[128,4], index: 3, kind: input, shape index: {}]
  %s4 = inlined_call_operand.vmem [shape: f32[1,4], index: 4, kind: input, shape index: {}]
  %s5 = inlined_call_operand.vmem [shape: f32[20,4], index: 5, kind: output, shape index: {}]
  %s6 = sld [smem:[#allocation0]]
  $region101: #{simple_classifier_forward.1} parent=0
    _
  %s8 = ssub.s32 1, %s6
  %s9 = scalar_select 0, %s8, %s6
  $region1: #{simple_classifier_forward.1} parent=0
    #allocation2 [shape = 'u8[16384]{0}', space=vmem, size = 0x4000, scoped, tag = 'output window, operand 0']
    loop: start=0, step=1, limit=4
    $region2: #{simple_classifier_forward.1} parent=1 // loop_pre_header
      _
    $region3: #{simple_classifier_forward.1} parent=1 // loop_header
      %s11 = sphi 0, %s15
      %p12 = scmp.ge.s32.totalorder %s11, 4
      %s21 = sphi 0, %s23
      %s24 = sphi 0, %s21
      %s25 = sphi 0, %s24
      %s41 = sphi 0, %s25
      %s45 = sphi 0, %s45
      %s47 = sphi 0, %s45
      %s48 = sphi 0, %s47
      %s62 = sphi 0, %s48
      %s66 = sphi 0, %s66
      %s68 = sphi 0, %s66
      %s69 = sphi 0, %s68
      %s83 = sphi 0, %s69
      %s87 = sphi 0, %s87
      %s89 = sphi 0, %s87
      %s90 = sphi 0, %s89
      %s104 = sphi 0, %s90
      %s108 = sphi 0, %s108
      %s110 = sphi 0, %s108
      %s111 = sphi 0, %s110
      %s125 = sphi 0, %s111
      %s131 = sphi 0, %s133
      %s134 = sphi 0, %s131
      %s135 = sphi 0, %s134
      %s151 = sphi 0, %s135
    $region4: #{simple_classifier_forward.1} parent=1 // loop_header_branch
      %14 = sbr.rel (%p12) target = $region8
    $region5: #{simple_classifier_forward.1} parent=1 // loop_body
      %s16 = ssub.s32 %s11, 1
      %s17 = ssub.s32 %s11, 2
      %s18 = sadd.s32 %s11, 1
      %s19 = ssub.s32 %s11, %s18
      %p20 = scmp.eq.s32.totalorder %s19, 0
      %s22 = sadd.s32 %s21, 1
      %s23 = scalar_select %p20, %s21, %s22
      %p26 = pneg %p20
      %p27 = scmp.eq.s32.totalorder %s11, 1
      %p28 = por %p26, %p27
      %p29 = scmp.ne.s32.totalorder %s21, %s24
      %p30 = scmp.eq.s32.totalorder %s11, 0
      %p31 = por %p29, %p30
      %p32 = scmp.ne.s32.totalorder %s21, %s24
      %p33 = scmp.eq.s32.totalorder %s16, 1
      %p34 = por %p32, %p33
      %p35 = scmp.ne.s32.totalorder %s24, %s25
      %p36 = scmp.eq.s32.totalorder %s16, 0
      %p37 = por %p35, %p36
      %p38 = scmp.ne.s32.totalorder %s24, %s25
      %p39 = scmp.eq.s32.totalorder %s17, 1
      %p40 = por %p38, %p39
      %p42 = scmp.ne.s32.totalorder %s25, %s41
      %p43 = scmp.eq.s32.totalorder %s17, 0
      %p44 = por %p42, %p43
      %s46 = sadd.s32 %s45, 1
      %p49 = scmp.eq.s32.totalorder %s11, 1
      %p50 = scmp.ne.s32.totalorder %s45, %s47
      %p51 = scmp.eq.s32.totalorder %s11, 0
      %p52 = por %p50, %p51
      %p53 = scmp.ne.s32.totalorder %s45, %s47
      %p54 = scmp.eq.s32.totalorder %s16, 1
      %p55 = por %p53, %p54
      %p56 = scmp.ne.s32.totalorder %s47, %s48
      %p57 = scmp.eq.s32.totalorder %s16, 0
      %p58 = por %p56, %p57
      %p59 = scmp.ne.s32.totalorder %s47, %s48
      %p60 = scmp.eq.s32.totalorder %s17, 1
      %p61 = por %p59, %p60
      %p63 = scmp.ne.s32.totalorder %s48, %s62
      %p64 = scmp.eq.s32.totalorder %s17, 0
      %p65 = por %p63, %p64
      %s67 = sadd.s32 %s66, 1
      %p70 = scmp.eq.s32.totalorder %s11, 1
      %p71 = scmp.ne.s32.totalorder %s66, %s68
      %p72 = scmp.eq.s32.totalorder %s11, 0
      %p73 = por %p71, %p72
      %p74 = scmp.ne.s32.totalorder %s66, %s68
      %p75 = scmp.eq.s32.totalorder %s16, 1
      %p76 = por %p74, %p75
      %p77 = scmp.ne.s32.totalorder %s68, %s69
      %p78 = scmp.eq.s32.totalorder %s16, 0
      %p79 = por %p77, %p78
      %p80 = scmp.ne.s32.totalorder %s68, %s69
      %p81 = scmp.eq.s32.totalorder %s17, 1
      %p82 = por %p80, %p81
      %p84 = scmp.ne.s32.totalorder %s69, %s83
      %p85 = scmp.eq.s32.totalorder %s17, 0
      %p86 = por %p84, %p85
      %s88 = sadd.s32 %s87, 1
      %p91 = scmp.eq.s32.totalorder %s11, 1
      %p92 = scmp.ne.s32.totalorder %s87, %s89
      %p93 = scmp.eq.s32.totalorder %s11, 0
      %p94 = por %p92, %p93
      %p95 = scmp.ne.s32.totalorder %s87, %s89
      %p96 = scmp.eq.s32.totalorder %s16, 1
      %p97 = por %p95, %p96
      %p98 = scmp.ne.s32.totalorder %s89, %s90
      %p99 = scmp.eq.s32.totalorder %s16, 0
      %p100 = por %p98, %p99
      %p101 = scmp.ne.s32.totalorder %s89, %s90
      %p102 = scmp.eq.s32.totalorder %s17, 1
      %p103 = por %p101, %p102
      %p105 = scmp.ne.s32.totalorder %s90, %s104
      %p106 = scmp.eq.s32.totalorder %s17, 0
      %p107 = por %p105, %p106
      %s109 = sadd.s32 %s108, 1
      %p112 = scmp.eq.s32.totalorder %s11, 1
      %p113 = scmp.ne.s32.totalorder %s108, %s110
      %p114 = scmp.eq.s32.totalorder %s11, 0
      %p115 = por %p113, %p114
      %p116 = scmp.ne.s32.totalorder %s108, %s110
      %p117 = scmp.eq.s32.totalorder %s16, 1
      %p118 = por %p116, %p117
      %p119 = scmp.ne.s32.totalorder %s110, %s111
      %p120 = scmp.eq.s32.totalorder %s16, 0
      %p121 = por %p119, %p120
      %p122 = scmp.ne.s32.totalorder %s110, %s111
      %p123 = scmp.eq.s32.totalorder %s17, 1
      %p124 = por %p122, %p123
      %p126 = scmp.ne.s32.totalorder %s111, %s125
      %p127 = scmp.eq.s32.totalorder %s17, 0
      %p128 = por %p126, %p127
      %s129 = ssub.s32 %s11, %s18
      %p130 = scmp.eq.s32.totalorder %s129, 0
      %s132 = sadd.s32 %s131, 1
      %s133 = scalar_select %p130, %s131, %s132
      %p136 = pneg %p130
      %p137 = scmp.eq.s32.totalorder %s11, 1
      %p138 = por %p136, %p137
      %p139 = scmp.ne.s32.totalorder %s131, %s134
      %p140 = scmp.eq.s32.totalorder %s11, 0
      %p141 = por %p139, %p140
      %p142 = scmp.ne.s32.totalorder %s131, %s134
      %p143 = scmp.eq.s32.totalorder %s16, 1
      %p144 = por %p142, %p143
      %p145 = scmp.ne.s32.totalorder %s134, %s135
      %p146 = scmp.eq.s32.totalorder %s16, 0
      %p147 = por %p145, %p146
      %p148 = scmp.ne.s32.totalorder %s134, %s135
      %p149 = scmp.eq.s32.totalorder %s17, 1
      %p150 = por %p148, %p149
      %p152 = scmp.ne.s32.totalorder %s135, %s151
      %p153 = scmp.eq.s32.totalorder %s17, 0
      %p154 = por %p152, %p153
      %p155 = scmp.le.s32.totalorder 1, %s11
      %p156 = scmp.lt.s32.totalorder %s11, 3
      %p157 = pnand %p155, %p156
      %p158 = pneg %p157
      // Predicated region
      $region9: #{simple_classifier_forward.1} parent=5 // pred_check
        _
      $region10: #{simple_classifier_forward.1} parent=5 // pred_check_branch
        %160 = sbr.rel (%p157) target = $region12
      $region11: #{simple_classifier_forward.1} parent=5 // pred_region
        %s161 = ssub.s32 %s11, 1
        // Predicated region
        $region13: #{simple_classifier_forward.1} parent=11 // pred_check
          %p162 = pneg %p58
        $region14: #{simple_classifier_forward.1} parent=11 // pred_check_branch
          %164 = sbr.rel (%p162) target = $region16
        $region15: #{simple_classifier_forward.1} parent=11 // pred_region
          _
        $region16: #{simple_classifier_forward.1} parent=11 // pred_fallthru
          _
        // Predicated region
        $region17: #{simple_classifier_forward.1} parent=11 // pred_check
          %p165 = pneg %p79
        $region18: #{simple_classifier_forward.1} parent=11 // pred_check_branch
          %167 = sbr.rel (%p165) target = $region20
        $region19: #{simple_classifier_forward.1} parent=11 // pred_region
          _
        $region20: #{simple_classifier_forward.1} parent=11 // pred_fallthru
          _
        // Predicated region
        $region21: #{simple_classifier_forward.1} parent=11 // pred_check
          %p168 = pneg %p100
        $region22: #{simple_classifier_forward.1} parent=11 // pred_check_branch
          %170 = sbr.rel (%p168) target = $region24
        $region23: #{simple_classifier_forward.1} parent=11 // pred_region
          _
        $region24: #{simple_classifier_forward.1} parent=11 // pred_fallthru
          _
        // Predicated region
        $region25: #{simple_classifier_forward.1} parent=11 // pred_check
          %p171 = pneg %p121
        $region26: #{simple_classifier_forward.1} parent=11 // pred_check_branch
          %173 = sbr.rel (%p171) target = $region28
        $region27: #{simple_classifier_forward.1} parent=11 // pred_region
          _
        $region28: #{simple_classifier_forward.1} parent=11 // pred_fallthru
          _
      $region12: #{simple_classifier_forward.1} parent=5 // pred_fallthru
        _
      %p174 = scmp.lt.s32.totalorder %s11, 2
      // Predicated region
      $region29: #{simple_classifier_forward.1} parent=5 // pred_check
        %p175 = pneg %p174
      $region30: #{simple_classifier_forward.1} parent=5 // pred_check_branch
        %177 = sbr.rel (%p175) target = $region32
      $region31: #{simple_classifier_forward.1} parent=5 // pred_region
        // Predicated region
        $region33: #{simple_classifier_forward.1} parent=31 // pred_check
          %p178 = pneg %p31
        $region34: #{simple_classifier_forward.1} parent=31 // pred_check_branch
          %180 = sbr.rel (%p178) target = $region36
        $region35: #{simple_classifier_forward.1} parent=31 // pred_region
          %s181 = smul.u32 2, %s11
          %s182 = ssub.s32 3, %s181
          %p183 = scmp.lt.s32.totalorder %s182, 2
          %s184 = scalar_select %p183, %s182, 2
          %s185 = smul.u32 8, %s184
          %p186 = scmp.lt.s32.totalorder %s181, 2
          %s187 = scalar_select %p186, %s181, 2
          %s188 = smul.addr %s187, 8
          %s189 = scalar_lea.vmem %s0, %s188
          %s190 = smul.u32 2, %s11
          %s191 = ssub.s32 3, %s190
          %p192 = scmp.lt.s32.totalorder %s191, 2
          %s193 = scalar_select %p192, %s191, 2
          %s194 = smul.u32 8, %s193
        $region36: #{simple_classifier_forward.1} parent=31 // pred_fallthru
          _
      $region32: #{simple_classifier_forward.1} parent=5 // pred_fallthru
        _
      %p195 = scmp.le.s32.totalorder 1, %s11
      %p196 = scmp.lt.s32.totalorder %s11, 3
      %p197 = pnand %p195, %p196
      %p198 = pneg %p197
      // Predicated region
      $region37: #{simple_classifier_forward.1} parent=5 // pred_check
        _
      $region38: #{simple_classifier_forward.1} parent=5 // pred_check_branch
        %200 = sbr.rel (%p197) target = $region40
      $region39: #{simple_classifier_forward.1} parent=5 // pred_region
        %s201 = ssub.s32 %s11, 1
        %s202 = smul.u32 2, %s16
        %s203 = ssub.s32 3, %s202
        %p204 = scmp.lt.s32.totalorder %s203, 2
        %s205 = scalar_select %p204, %s203, 2
        %s206 = smul.u32 8, %s205
        %p207 = scmp.lt.s32.totalorder %s202, 2
        %s208 = scalar_select %p207, %s202, 2
        %s209 = smul.addr %s208, 8
        %s210 = scalar_lea.vmem %s0, %s209
        %p211 = pneg %p37
        %p212 = pneg %p34
        %p213 = pneg %p58
        %p214 = pneg %p55
        %p215 = pneg %p79
        %p216 = pneg %p76
        %p217 = pneg %p100
        %p218 = pneg %p97
        %p219 = pneg %p121
        %p220 = pneg %p118
        %p221 = pneg %p147
        %p222 = pneg %p144
        %s223 = sand.u32 %s134, 1
        %s224 = sand.u32 %s134, 1
        %s225 = smul.addr %s224, 16
        %s226 = scalar_lea.vmem [#allocation2], %s225
        %s227 = smul.u32 2, %s16
        %s228 = ssub.s32 3, %s227
        %p229 = scmp.lt.s32.totalorder %s228, 2
        %s230 = scalar_select %p229, %s228, 2
        %s231 = smul.u32 8, %s230
        %p232 = scmp.lt.s32.totalorder %s227, 2
        %s233 = scalar_select %p232, %s227, 2
        %s234 = smul.addr %s233, 8
        %s235 = scalar_lea.vmem %s0, %s234
        %s236 = smul.u32 2, %s16
        %s237 = ssub.s32 3, %s236
        %p238 = scmp.lt.s32.totalorder %s237, 2
        %s239 = scalar_select %p238, %s237, 2
        %s240 = smul.u32 8, %s239
        %s241 = smul.u32 2, %s16
        %s242 = ssub.s32 3, %s241
        %p243 = scmp.lt.s32.totalorder %s242, 2
        %s244 = scalar_select %p243, %s242, 2
        %s245 = smul.u32 8, %s244
        %v247 = vld [vmem:[%s235] sm:$0xff]
        %v248 = vld [vmem:[%s235 + $0x8] sm:$0xff]
        %v249 = vpack.c.bf16 %v248, %v247
        %v250 = vld [vmem:[%s1] sm:$0xf]
        %v251 = vld [vmem:[%s1 + $0x4] sm:$0xf]
        %v252 = vld [vmem:[%s1 + $0x8] sm:$0xf]
        %v253 = vld [vmem:[%s1 + $0xc] sm:$0xf]
        %v254 = vld [vmem:[%s2] sm:$0x1]
        %v256 = vperm.slane %v254, 0
        %v262 = vunpack.c.l.b16 %v250
        %v263 = vunpack.c.l.b16 %v251
        %v264 = vunpack.c.l.b16 %v252
        %v265 = vunpack.c.l.b16 %v253
        %v266 = vpack.c.b16 %v263, %v262
        %v267 = vpack.c.b16 %v265, %v264
        %vm270 = vcmask 261120
        %v272 = vsel %vm270, %v249, 0
        %274 = vmatpush.bf16.msra.mxu0 0
        %275 = vmatpush.bf16.msra.mxu0 0
        %276 = vmatpush.bf16.msra.mxu0 0
        %277 = vmatpush.bf16.msra.mxu0 0
        %278 = vmatpush.bf16.msra.mxu0 0
        %279 = vmatpush.bf16.msra.mxu0 0
        %280 = vmatpush.bf16.msra.mxu0 %v267
        %281 = vmatpush.bf16.msra.mxu0 %v266
        %282 = vmatmul.bf16.gmra.mxu0 %v272
        %v283 = vpop.f32.mrf.mxu0
        %v284 = vadd.f32 %v256, %v283
        %v285 = vpop.f32.mrf.mxu0
        %v286 = vadd.f32 %v256, %v285
        %287 = vdwg.mxu0
        %v288 = vmax.f32 %v284, 0.0
        %v289 = vmax.f32 %v286, 0.0
        %v290 = vpack.c.bf16 %v289, %v288
        %v291 = vld [vmem:[%s3] sm:$0xf]
        %v292 = vld [vmem:[%s3 + $0x4] sm:$0xf]
        %v293 = vld [vmem:[%s3 + $0x8] sm:$0xf]
        %v294 = vld [vmem:[%s3 + $0xc] sm:$0xf]
        %v295 = vld [vmem:[%s3 + $0x10] sm:$0xf]
        %v296 = vld [vmem:[%s3 + $0x14] sm:$0xf]
        %v297 = vld [vmem:[%s3 + $0x18] sm:$0xf]
        %v298 = vld [vmem:[%s3 + $0x1c] sm:$0xf]
        %v299 = vld [vmem:[%s3 + $0x20] sm:$0xf]
        %v300 = vld [vmem:[%s3 + $0x24] sm:$0xf]
        %v301 = vld [vmem:[%s3 + $0x28] sm:$0xf]
        %v302 = vld [vmem:[%s3 + $0x2c] sm:$0xf]
        %v303 = vld [vmem:[%s3 + $0x30] sm:$0xf]
        %v304 = vld [vmem:[%s3 + $0x34] sm:$0xf]
        %v305 = vld [vmem:[%s3 + $0x38] sm:$0xf]
        %v306 = vld [vmem:[%s3 + $0x3c] sm:$0xf]
        %v307 = vld [vmem:[%s4] sm:$0x1]
        %v309 = vperm.slane %v307, 0
        %v327 = vunpack.c.l.b16 %v291
        %v328 = vunpack.c.l.b16 %v292
        %v329 = vunpack.c.l.b16 %v293
        %v330 = vunpack.c.l.b16 %v294
        %v331 = vunpack.c.l.b16 %v295
        %v332 = vunpack.c.l.b16 %v296
        %v333 = vunpack.c.l.b16 %v297
        %v334 = vunpack.c.l.b16 %v298
        %v335 = vunpack.c.l.b16 %v299
        %v336 = vunpack.c.l.b16 %v300
        %v337 = vunpack.c.l.b16 %v301
        %v338 = vunpack.c.l.b16 %v302
        %v339 = vunpack.c.l.b16 %v303
        %v340 = vunpack.c.l.b16 %v304
        %v341 = vunpack.c.l.b16 %v305
        %v342 = vunpack.c.l.b16 %v306
        %v343 = vpack.c.b16 %v328, %v327
        %v344 = vpack.c.b16 %v330, %v329
        %v345 = vpack.c.b16 %v332, %v331
        %v346 = vpack.c.b16 %v334, %v333
        %v347 = vpack.c.b16 %v336, %v335
        %v348 = vpack.c.b16 %v338, %v337
        %v349 = vpack.c.b16 %v340, %v339
        %v350 = vpack.c.b16 %v342, %v341
        %359 = vmatpush.bf16.msra.mxu0 %v350
        %360 = vmatpush.bf16.msra.mxu0 %v349
        %361 = vmatpush.bf16.msra.mxu0 %v348
        %362 = vmatpush.bf16.msra.mxu0 %v347
        %363 = vmatpush.bf16.msra.mxu0 %v346
        %364 = vmatpush.bf16.msra.mxu0 %v345
        %365 = vmatpush.bf16.msra.mxu0 %v344
        %366 = vmatpush.bf16.msra.mxu0 %v343
        %367 = vmatmul.bf16.gmra.mxu0 %v290
        %v368 = vpop.f32.mrf.mxu0
        %v369 = vadd.f32 %v309, %v368
        %v370 = vpop.f32.mrf.mxu0
        %v371 = vadd.f32 %v309, %v370
        %372 = vdwg.mxu0
        %vm373 = vcmask 31744
        %374 = vst.msk [vmem:[%s226] sm:$0xff] %vm373, %v369
        %375 = vst.msk [vmem:[%s226 + $0x8] sm:$0xff] %vm373, %v371
        %s376 = sand.u32 %s134, 1
        %s377 = sand.u32 %s134, 1
        %s378 = smul.addr %s377, 16
        %s379 = scalar_lea.vmem [#allocation2], %s378
        // Predicated region
        $region41: #{simple_classifier_forward.1} parent=39 // pred_check
          %p380 = pneg %p144
        $region42: #{simple_classifier_forward.1} parent=39 // pred_check_branch
          %382 = sbr.rel (%p380) target = $region44
        $region43: #{simple_classifier_forward.1} parent=39 // pred_region
          %s383 = smul.u32 2, %s16
          %s384 = ssub.s32 3, %s383
          %p385 = scmp.lt.s32.totalorder %s384, 2
          %s386 = scalar_select %p385, %s384, 2
          %s387 = smul.u32 8, %s386
          %p388 = scmp.ne.s32.totalorder 0, %s387
          %s389 = smul.addr %s383, 8
          %s390 = scalar_lea.vmem %s5, %s389
          // Predicated region
          $region45: #{simple_classifier_forward.1} parent=43 // pred_check
            %p391 = pneg %p388
          $region46: #{simple_classifier_forward.1} parent=43 // pred_check_branch
            %393 = sbr.rel (%p391) target = $region48
          $region47: #{simple_classifier_forward.1} parent=43 // pred_region
            // Predicated region
            $region49: #{simple_classifier_forward.1} parent=47 // pred_check
              _
            $region50: #{simple_classifier_forward.1} parent=47 // pred_check_branch
              %395 = sbr.rel (0) target = $region52
            $region51: #{simple_classifier_forward.1} parent=47 // pred_region
              // Predicated region
              $region71: #{simple_classifier_forward.1} parent=51 // pred_check
                _
              $region72: #{simple_classifier_forward.1} parent=51 // pred_check_branch
                %447 = sbr.rel (0) target = $region74
              $region73: #{simple_classifier_forward.1} parent=51 // pred_region
                %s448 = sshrl.u32 %s386, 1
                // While loop
                $region75: #{simple_classifier_forward.1} parent=73 // loop_pre_header
                  _
                $region76: #{simple_classifier_forward.1} parent=73 // loop_header
                  %s450 = sphi 0, %s452
                  %p451 = scmp.ge.s32.totalorder %s450, %s448
                  %s455 = sphi 0, %s464
                  %s456 = sphi %s379, %s467
                  %s457 = sphi %s390, %s468
                $region77: #{simple_classifier_forward.1} parent=73 // loop_header_branch
                  %454 = sbr.rel (%p451) target = $region81
                $region78: #{simple_classifier_forward.1} parent=73 // loop_body
                  %v458 = vld [vmem:[%s456] sm:$0xff]
                  %459 = vst [vmem:[%s457] sm:$0xff] %v458
                  %v460 = vld [vmem:[%s456 + $0x8] sm:$0xff]
                  %461 = vst [vmem:[%s457 + $0x8] sm:$0xff] %v460
                  %s462 = sadd.s32 1, %s455
                  %p463 = scmp.ge.s32.totalorder %s462, %s448
                  %s464 = scalar_select %p463, 0, %s462
                  %s465 = smul.u32 %s464, 16
                  %s466 = smul.u32 %s464, 16
                  %s467 = scalar_lea.vmem %s379, %s465 [#allocation2]
                  %s468 = scalar_lea.vmem %s390, %s466
                $region79: #{simple_classifier_forward.1} parent=73 // loop_footer
                  %s452 = sadd.s32 %s450, 1
                $region80: #{simple_classifier_forward.1} parent=73 // loop_footer_branch
                  %449 = sbr.rel target = $region76
                $region81: #{simple_classifier_forward.1} parent=73 // loop_exit
                  _
                %s469 = sshrl.u32 %s386, 1
                %s470 = sand.u32 %s386, 1
                %s471 = smul.u32 %s469, 2
                %s472 = smul.u32 8, %s471
                %s473 = scalar_lea.vmem %s379, %s472 [#allocation2]
                %s474 = smul.u32 8, %s471
                %s475 = scalar_lea.vmem %s390, %s474
                // While loop
                $region82: #{simple_classifier_forward.1} parent=73 // loop_pre_header
                  _
                $region83: #{simple_classifier_forward.1} parent=73 // loop_header
                  %s477 = sphi 0, %s479
                  %p478 = scmp.ge.s32.totalorder %s477, %s470
                  %s482 = sphi 0, %s489
                  %s483 = sphi %s473, %s492
                  %s484 = sphi %s475, %s493
                $region84: #{simple_classifier_forward.1} parent=73 // loop_header_branch
                  %481 = sbr.rel (%p478) target = $region88
                $region85: #{simple_classifier_forward.1} parent=73 // loop_body
                  %v485 = vld [vmem:[%s483] sm:$0xff]
                  %486 = vst [vmem:[%s484] sm:$0xff] %v485
                  %s487 = sadd.s32 1, %s482
                  %p488 = scmp.ge.s32.totalorder %s487, %s470
                  %s489 = scalar_select %p488, 0, %s487
                  %s490 = smul.u32 %s489, 8
                  %s491 = smul.u32 %s489, 8
                  %s492 = scalar_lea.vmem %s473, %s490 [#allocation2]
                  %s493 = scalar_lea.vmem %s475, %s491
                $region86: #{simple_classifier_forward.1} parent=73 // loop_footer
                  %s479 = sadd.s32 %s477, 1
                $region87: #{simple_classifier_forward.1} parent=73 // loop_footer_branch
                  %476 = sbr.rel target = $region83
                $region88: #{simple_classifier_forward.1} parent=73 // loop_exit
                  _
              $region74: #{simple_classifier_forward.1} parent=51 // pred_fallthru
                _
              // Predicated region
              $region89: #{simple_classifier_forward.1} parent=51 // pred_check
                _
              $region90: #{simple_classifier_forward.1} parent=51 // pred_check_branch
                %495 = sbr.rel target = $region92
              $region91: #{simple_classifier_forward.1} parent=51 // pred_region
                _
              $region92: #{simple_classifier_forward.1} parent=51 // pred_fallthru
                _
            $region52: #{simple_classifier_forward.1} parent=47 // pred_fallthru
              _
            // Predicated region
            $region53: #{simple_classifier_forward.1} parent=47 // pred_check
              _
            $region54: #{simple_classifier_forward.1} parent=47 // pred_check_branch
              %397 = sbr.rel target = $region56
            $region55: #{simple_classifier_forward.1} parent=47 // pred_region
              %s399 = ssub.s32 256, 1
              %s400 = sshrl.u32 %s386, 1
              // While loop
              $region57: #{simple_classifier_forward.1} parent=55 // loop_pre_header
                _
              $region58: #{simple_classifier_forward.1} parent=55 // loop_header
                %s402 = sphi 0, %s404
                %p403 = scmp.ge.s32.totalorder %s402, %s400
                %s407 = sphi 0, %s416
                %s408 = sphi %s379, %s419
                %s409 = sphi %s390, %s420
              $region59: #{simple_classifier_forward.1} parent=55 // loop_header_branch
                %406 = sbr.rel (%p403) target = $region63
              $region60: #{simple_classifier_forward.1} parent=55 // loop_body
                %v410 = vld [vmem:[%s408] sm:%s399]
                %411 = vst [vmem:[%s409] sm:%s399] %v410
                %v412 = vld [vmem:[%s408 + $0x8] sm:%s399]
                %413 = vst [vmem:[%s409 + $0x8] sm:%s399] %v412
                %s414 = sadd.s32 1, %s407
                %p415 = scmp.ge.s32.totalorder %s414, %s400
                %s416 = scalar_select %p415, 0, %s414
                %s417 = smul.u32 %s416, 16
                %s418 = smul.u32 %s416, 16
                %s419 = scalar_lea.vmem %s379, %s417 [#allocation2]
                %s420 = scalar_lea.vmem %s390, %s418
              $region61: #{simple_classifier_forward.1} parent=55 // loop_footer
                %s404 = sadd.s32 %s402, 1
              $region62: #{simple_classifier_forward.1} parent=55 // loop_footer_branch
                %401 = sbr.rel target = $region58
              $region63: #{simple_classifier_forward.1} parent=55 // loop_exit
                _
              %s421 = sshrl.u32 %s386, 1
              %s422 = sand.u32 %s386, 1
              %s423 = smul.u32 %s421, 2
              %s424 = smul.u32 8, %s423
              %s425 = scalar_lea.vmem %s379, %s424 [#allocation2]
              %s426 = smul.u32 8, %s423
              %s427 = scalar_lea.vmem %s390, %s426
              // While loop
              $region64: #{simple_classifier_forward.1} parent=55 // loop_pre_header
                _
              $region65: #{simple_classifier_forward.1} parent=55 // loop_header
                %s429 = sphi 0, %s431
                %p430 = scmp.ge.s32.totalorder %s429, %s422
                %s434 = sphi 0, %s441
                %s435 = sphi %s425, %s444
                %s436 = sphi %s427, %s445
              $region66: #{simple_classifier_forward.1} parent=55 // loop_header_branch
                %433 = sbr.rel (%p430) target = $region70
              $region67: #{simple_classifier_forward.1} parent=55 // loop_body
                %v437 = vld [vmem:[%s435] sm:%s399]
                %438 = vst [vmem:[%s436] sm:%s399] %v437
                %s439 = sadd.s32 1, %s434
                %p440 = scmp.ge.s32.totalorder %s439, %s422
                %s441 = scalar_select %p440, 0, %s439
                %s442 = smul.u32 %s441, 8
                %s443 = smul.u32 %s441, 8
                %s444 = scalar_lea.vmem %s425, %s442 [#allocation2]
                %s445 = scalar_lea.vmem %s427, %s443
              $region68: #{simple_classifier_forward.1} parent=55 // loop_footer
                %s431 = sadd.s32 %s429, 1
              $region69: #{simple_classifier_forward.1} parent=55 // loop_footer_branch
                %428 = sbr.rel target = $region65
              $region70: #{simple_classifier_forward.1} parent=55 // loop_exit
                _
            $region56: #{simple_classifier_forward.1} parent=47 // pred_fallthru
              _
          $region48: #{simple_classifier_forward.1} parent=43 // pred_fallthru
            _
          %496 = vnop
        $region44: #{simple_classifier_forward.1} parent=39 // pred_fallthru
          _
      $region40: #{simple_classifier_forward.1} parent=5 // pred_fallthru
        _
      %p497 = scmp.le.s32.totalorder 2, %s11
      // Predicated region
      $region93: #{simple_classifier_forward.1} parent=5 // pred_check
        %p498 = pneg %p497
      $region94: #{simple_classifier_forward.1} parent=5 // pred_check_branch
        %500 = sbr.rel (%p498) target = $region96
      $region95: #{simple_classifier_forward.1} parent=5 // pred_region
        %s501 = ssub.s32 %s11, 2
        // Predicated region
        $region97: #{simple_classifier_forward.1} parent=95 // pred_check
          %p502 = pneg %p150
        $region98: #{simple_classifier_forward.1} parent=95 // pred_check_branch
          %504 = sbr.rel (%p502) target = $region100
        $region99: #{simple_classifier_forward.1} parent=95 // pred_region
          %s505 = sand.u32 %s135, 1
          %s506 = sand.u32 %s135, 1
          %s507 = smul.addr %s506, 16
          %s508 = scalar_lea.vmem [#allocation2], %s507
        $region100: #{simple_classifier_forward.1} parent=95 // pred_fallthru
          _
      $region96: #{simple_classifier_forward.1} parent=5 // pred_fallthru
        _
    $region6: #{simple_classifier_forward.1} parent=1 // loop_footer
      %s15 = sadd.s32 1, %s11
    $region7: #{simple_classifier_forward.1} parent=1 // loop_footer_branch
      %10 = sbr.rel target = $region3
    $region8: #{simple_classifier_forward.1} parent=1 // loop_exit
      _

</llo_original>
